<compile_context>
chip_gen: v7x
topology: tpu7x:2x2x1
jax: 0.10.0
libtpu: 0.0.40
codegen_flags: <defaults>
</compile_context>

<pallas_src>
import jax
import jax.numpy as jnp
from jax.experimental import pallas as pl
from jax.experimental.pallas import tpu as pltpu

# Static shapes chosen so the PyTorch slice bounds are valid
# (dim0 >= 1, dim1 >= 12, dim2 >= 14).
X_SHAPE = (2, 13, 16)
OUT_SHAPE = (1, 11, 7)       # 0:1 -> 1, 1:12 -> 11, 1:14:2 -> 7
Y_SHAPE = (2, 4, 8)
Z_SHAPE = (3, 5, 7)

# The lane indices picked by 1:14:2 (kept explicit so a shape change can't
# silently desynchronize the kernel from the PyTorch slice spec).
_LANE_SRC = tuple(range(1, 14, 2))   # (1, 3, 5, 7, 9, 11, 13)


def _slice_kernel(x_ref, o_ref):
    # x_ref: full (2, 13, 16) array resident in VMEM (a couple of vregs).
    # Contiguous slab view: dim0 0:1 and dim1 1:12 are unit-stride sub-views
    # (plain vld; the sublane offset is folded into the load).
    slab = x_ref[0:1, 1:12, :]                      # (1, 11, 16)
    # Stride-2 lane pick done with unit-stride column slices + 1-lane stores.
    # Statically unrolled (7 iterations), no strided-slice / gather lowering.
    for j, src in enumerate(_LANE_SRC):
        o_ref[:, :, j:j + 1] = slab[:, :, src:src + 1]


def tensor_slice(x):
    """x[0:1, 1:12, 1:14:2] as a single gridless Pallas dispatch."""
    assert x.shape == X_SHAPE, x.shape
    return pl.pallas_call(
        _slice_kernel,
        out_shape=jax.ShapeDtypeStruct(OUT_SHAPE, x.dtype),
        # Gridless: single invocation, whole-array blocks, no pipeline
        # scaffolding.  Block dims equal array dims, so the (8, 128)
        # BlockSpec tiling constraint does not apply.
        in_specs=[pl.BlockSpec(memory_space=pltpu.MemorySpace.VMEM)],
        out_specs=pl.BlockSpec(memory_space=pltpu.MemorySpace.VMEM),
    )(x)


@jax.jit
def model_forward(x, y, z):
    # Matches Model.forward: only x is sliced, y and z are passed through.
    return tensor_slice(x), y, z


if __name__ == "__main__":
    key = jax.random.PRNGKey(0)
    kx, ky, kz = jax.random.split(key, 3)

    x = jax.random.normal(kx, X_SHAPE, dtype=jnp.float32)
    y = jax.random.normal(ky, Y_SHAPE, dtype=jnp.float32)
    z = jax.random.normal(kz, Z_SHAPE, dtype=jnp.float32)

    out_x, out_y, out_z = model_forward(x, y, z)
    jax.block_until_ready((out_x, out_y, out_z))

    # Reference semantics check (pure JAX strided slice). The kernel is a
    # pure copy, so the result must be bit-exact.
    ref_x = x[0:1, 1:12, 1:14:2]
    assert out_x.shape == OUT_SHAPE, out_x.shape
    assert jnp.array_equal(out_x, ref_x), "slice mismatch"
    assert jnp.array_equal(out_y, y) and jnp.array_equal(out_z, z), "passthrough mismatch"

    print("KERNEL_OK")
</pallas_src>

<mosaic_0001>
module attributes {stable_mosaic.version = 11 : i64} {
  func.func @_slice_kernel(%arg0: memref<2x13x16xf32, #tpu.memory_space<vmem>>, %arg1: memref<1x11x7xf32, #tpu.memory_space<vmem>>) attributes {dimension_semantics = [], scalar_prefetch = 0 : i64, scratch_operands = 0 : i64, tpu.core_type = #tpu.core_type<tc>} {
    %c0 = arith.constant 0 : index
    %c1 = arith.constant 1 : index
    %c0_0 = arith.constant 0 : index
    %0 = vector.load %arg0[%c0, %c1, %c0_0] : memref<2x13x16xf32, #tpu.memory_space<vmem>>, vector<1x11x16xf32>
    %1 = vector.extract_strided_slice %0 {offsets = [0, 0, 1], sizes = [1, 11, 1], strides = [1, 1, 1]} : vector<1x11x16xf32> to vector<1x11x1xf32>
    %c0_1 = arith.constant 0 : index
    %c0_2 = arith.constant 0 : index
    %c0_3 = arith.constant 0 : index
    %2 = vector.load %arg1[%c0_1, %c0_2, %c0_3] : memref<1x11x7xf32, #tpu.memory_space<vmem>>, vector<1x11x1xf32>
    tpu.vector_store %arg1[%c0_1, %c0_2, %c0_3], %1 {strides = array<i32>} : memref<1x11x7xf32, #tpu.memory_space<vmem>>, vector<1x11x1xf32>,
    %3 = vector.extract_strided_slice %0 {offsets = [0, 0, 3], sizes = [1, 11, 1], strides = [1, 1, 1]} : vector<1x11x16xf32> to vector<1x11x1xf32>
    %c0_4 = arith.constant 0 : index
    %c0_5 = arith.constant 0 : index
    %c1_6 = arith.constant 1 : index
    %4 = vector.load %arg1[%c0_4, %c0_5, %c1_6] : memref<1x11x7xf32, #tpu.memory_space<vmem>>, vector<1x11x1xf32>
    tpu.vector_store %arg1[%c0_4, %c0_5, %c1_6], %3 {strides = array<i32>} : memref<1x11x7xf32, #tpu.memory_space<vmem>>, vector<1x11x1xf32>,
    %5 = vector.extract_strided_slice %0 {offsets = [0, 0, 5], sizes = [1, 11, 1], strides = [1, 1, 1]} : vector<1x11x16xf32> to vector<1x11x1xf32>
    %c0_7 = arith.constant 0 : index
    %c0_8 = arith.constant 0 : index
    %c2 = arith.constant 2 : index
    %6 = vector.load %arg1[%c0_7, %c0_8, %c2] : memref<1x11x7xf32, #tpu.memory_space<vmem>>, vector<1x11x1xf32>
    tpu.vector_store %arg1[%c0_7, %c0_8, %c2], %5 {strides = array<i32>} : memref<1x11x7xf32, #tpu.memory_space<vmem>>, vector<1x11x1xf32>,
    %7 = vector.extract_strided_slice %0 {offsets = [0, 0, 7], sizes = [1, 11, 1], strides = [1, 1, 1]} : vector<1x11x16xf32> to vector<1x11x1xf32>
    %c0_9 = arith.constant 0 : index
    %c0_10 = arith.constant 0 : index
    %c3 = arith.constant 3 : index
    %8 = vector.load %arg1[%c0_9, %c0_10, %c3] : memref<1x11x7xf32, #tpu.memory_space<vmem>>, vector<1x11x1xf32>
    tpu.vector_store %arg1[%c0_9, %c0_10, %c3], %7 {strides = array<i32>} : memref<1x11x7xf32, #tpu.memory_space<vmem>>, vector<1x11x1xf32>,
    %9 = vector.extract_strided_slice %0 {offsets = [0, 0, 9], sizes = [1, 11, 1], strides = [1, 1, 1]} : vector<1x11x16xf32> to vector<1x11x1xf32>
    %c0_11 = arith.constant 0 : index
    %c0_12 = arith.constant 0 : index
    %c4 = arith.constant 4 : index
    %10 = vector.load %arg1[%c0_11, %c0_12, %c4] : memref<1x11x7xf32, #tpu.memory_space<vmem>>, vector<1x11x1xf32>
    tpu.vector_store %arg1[%c0_11, %c0_12, %c4], %9 {strides = array<i32>} : memref<1x11x7xf32, #tpu.memory_space<vmem>>, vector<1x11x1xf32>,
    %11 = vector.extract_strided_slice %0 {offsets = [0, 0, 11], sizes = [1, 11, 1], strides = [1, 1, 1]} : vector<1x11x16xf32> to vector<1x11x1xf32>
    %c0_13 = arith.constant 0 : index
    %c0_14 = arith.constant 0 : index
    %c5 = arith.constant 5 : index
    %12 = vector.load %arg1[%c0_13, %c0_14, %c5] : memref<1x11x7xf32, #tpu.memory_space<vmem>>, vector<1x11x1xf32>
    tpu.vector_store %arg1[%c0_13, %c0_14, %c5], %11 {strides = array<i32>} : memref<1x11x7xf32, #tpu.memory_space<vmem>>, vector<1x11x1xf32>,
    %13 = vector.extract_strided_slice %0 {offsets = [0, 0, 13], sizes = [1, 11, 1], strides = [1, 1, 1]} : vector<1x11x16xf32> to vector<1x11x1xf32>
    %c0_15 = arith.constant 0 : index
    %c0_16 = arith.constant 0 : index
    %c6 = arith.constant 6 : index
    %14 = vector.load %arg1[%c0_15, %c0_16, %c6] : memref<1x11x7xf32, #tpu.memory_space<vmem>>, vector<1x11x1xf32>
    tpu.vector_store %arg1[%c0_15, %c0_16, %c6], %13 {strides = array<i32>} : memref<1x11x7xf32, #tpu.memory_space<vmem>>, vector<1x11x1xf32>,
    return
  }
}

</mosaic_0001>

<llo_original>
// kernel: model_forward.1
$region0: #{model_forward.1}
  #allocation0 [shape = 'u32[]', space=smem, size = 0x4, offset = 0x4, fixed_abs, tag = 'smem constant byte address 0x4 - core index']
  #allocation1 [shape = 'u32[144,128]{1,0:T(1,128)}', space=vmem, size = 0x12000, scoped, tag = 'internal scratch']
  %s0 = inlined_call_operand.vmem [shape: f32[2,13,16], index: 0, kind: input, shape index: {}]
  %s1 = inlined_call_operand.vmem [shape: f32[1,11,7], index: 1, kind: output, shape index: {}]
  %s2 = sld [smem:[#allocation0]]
  $region14: #{model_forward.1} parent=0
    _
  %s4 = ssub.s32 1, %s2
  %s5 = scalar_select 0, %s4, %s2
  // Predicated region
  $region2: #{model_forward.1} parent=0 // pred_check
    _
  $region3: #{model_forward.1} parent=0 // pred_check_branch
    %7 = sbr.rel (0) target = $region5
  $region4: #{model_forward.1} parent=0 // pred_region
    _
  $region5: #{model_forward.1} parent=0 // pred_fallthru
    _
  %v8 = vld [vmem:[%s0 + $0x1] sm:$0xff]
  %v9 = vld [vmem:[%s0 + $0x9] sm:$0x7]
  %12 = vrot.lane.b32.xlu0 %v8, 127
  %v13 = vpop.permute.xlu0 %12
  %14 = vrot.lane.b32.xlu0 %v9, 127
  %v15 = vpop.permute.xlu0 %14
  %vm18 = vcmask 7168
  %19 = vst.msk [vmem:[%s1] sm:$0xff] %vm18, %v13
  %vm20 = vcmask 2048
  %21 = vst.msk [vmem:[%s1 + $0x8] sm:$0x7] %vm20, %v15
  %22 = vrot.lane.b32.xlu0 %v8, 126
  %v23 = vpop.permute.xlu0 %22
  %24 = vrot.lane.b32.xlu0 %v9, 126
  %v25 = vpop.permute.xlu0 %24
  %vm28 = vcmask 15368
  %29 = vst.msk [vmem:[%s1] sm:$0xff] %vm28, %v23
  %vm30 = vcmask 10248
  %31 = vst.msk [vmem:[%s1 + $0x8] sm:$0x7] %vm30, %v25
  %32 = vrot.lane.b32.xlu0 %v8, 125
  %v33 = vpop.permute.xlu0 %32
  %34 = vrot.lane.b32.xlu0 %v9, 125
  %v35 = vpop.permute.xlu0 %34
  %vm38 = vcmask 23568
  %39 = vst.msk [vmem:[%s1] sm:$0xff] %vm38, %v33
  %vm40 = vcmask 18448
  %41 = vst.msk [vmem:[%s1 + $0x8] sm:$0x7] %vm40, %v35
  %42 = vrot.lane.b32.xlu0 %v8, 124
  %v43 = vpop.permute.xlu0 %42
  %44 = vrot.lane.b32.xlu0 %v9, 124
  %v45 = vpop.permute.xlu0 %44
  %vm48 = vcmask 31768
  %49 = vst.msk [vmem:[%s1] sm:$0xff] %vm48, %v43
  %vm50 = vcmask 26648
  %51 = vst.msk [vmem:[%s1 + $0x8] sm:$0x7] %vm50, %v45
  %52 = vrot.lane.b32.xlu0 %v8, 123
  %v53 = vpop.permute.xlu0 %52
  %54 = vrot.lane.b32.xlu0 %v9, 123
  %v55 = vpop.permute.xlu0 %54
  %vm58 = vcmask 39968
  %59 = vst.msk [vmem:[%s1] sm:$0xff] %vm58, %v53
  %vm60 = vcmask 34848
  %61 = vst.msk [vmem:[%s1 + $0x8] sm:$0x7] %vm60, %v55
  %62 = vrot.lane.b32.xlu0 %v8, 122
  %v63 = vpop.permute.xlu0 %62
  %64 = vrot.lane.b32.xlu0 %v9, 122
  %v65 = vpop.permute.xlu0 %64
  %vm68 = vcmask 48168
  %69 = vst.msk [vmem:[%s1] sm:$0xff] %vm68, %v63
  %vm70 = vcmask 43048
  %71 = vst.msk [vmem:[%s1 + $0x8] sm:$0x7] %vm70, %v65
  %72 = vrot.lane.b32.xlu0 %v8, 121
  %v73 = vpop.permute.xlu0 %72
  %74 = vrot.lane.b32.xlu0 %v9, 121
  %v75 = vpop.permute.xlu0 %74
  %vm78 = vcmask 56368
  %79 = vst.msk [vmem:[%s1] sm:$0xff] %vm78, %v73
  %vm80 = vcmask 51248
  %81 = vst.msk [vmem:[%s1 + $0x8] sm:$0x7] %vm80, %v75
  // Predicated region
  $region6: #{model_forward.1} parent=0 // pred_check
    _
  $region7: #{model_forward.1} parent=0 // pred_check_branch
    %83 = sbr.rel (0) target = $region9
  $region8: #{model_forward.1} parent=0 // pred_region
    _
  $region9: #{model_forward.1} parent=0 // pred_fallthru
    _
  // Predicated region
  $region10: #{model_forward.1} parent=0 // pred_check
    _
  $region11: #{model_forward.1} parent=0 // pred_check_branch
    %85 = sbr.rel (0) target = $region13
  $region12: #{model_forward.1} parent=0 // pred_region
    _
  $region13: #{model_forward.1} parent=0 // pred_fallthru
    _

</llo_original>
